<compile_context>
chip_gen: v6e
topology: v6e:2x2x1
jax: 0.10.0
libtpu: 0.0.40
codegen_flags: <defaults>
</compile_context>

<pallas_src>
import functools

import jax
import jax.numpy as jnp
from jax.experimental import pallas as pl
from jax.experimental.pallas import tpu as pltpu


# ----------------------------------------------------------------------------
# Kernels
# ----------------------------------------------------------------------------
def _pool_conv_kernel(x_ref, w_ref, y_ref, acc_ref, *, inv_hw):
    """x_ref: (1, Cin, T); w_ref: (Cout, Cin); y_ref: (1, Cout, 1); acc: (Cin, 1)."""
    k = pl.program_id(1)

    @pl.when(k == 0)
    def _init():
        acc_ref[...] = jnp.zeros_like(acc_ref)

    # Partial sum over the lane (spatial) axis; accumulate in f32.
    x = x_ref[0].astype(jnp.float32)                        # (Cin, T)
    acc_ref[...] += jnp.sum(x, axis=-1, keepdims=True)      # (Cin, 1)

    @pl.when(k == pl.num_programs(1) - 1)
    def _finalize():
        pooled = acc_ref[...] * inv_hw                      # (Cin, 1)  mean pool
        w = w_ref[...].astype(jnp.float32)                  # (Cout, Cin)
        y = jnp.dot(w, pooled, preferred_element_type=jnp.float32)   # (Cout, 1)
        y = jnp.maximum(y, 0.0)                             # ReLU
        y_ref[...] = y[None]                                # (1, Cout, 1)


def _broadcast_kernel(y_ref, o_ref):
    """y_ref: (1, Cout, 1) f32; o_ref: (1, Cout, T) lane-dense broadcast store."""
    o_ref[...] = jnp.broadcast_to(y_ref[...], o_ref.shape).astype(o_ref.dtype)


# ----------------------------------------------------------------------------
# Tiling helpers
# ----------------------------------------------------------------------------
def _round_up(a, b):
    return (a + b - 1) // b * b


def _pick_reduce_tile(hw, cin, itemsize):
    """Spatial tile for the reduction: multiple of 128, input block ~<=4 MiB,
    minimize zero-padding (exact divisors preferred), prefer larger tiles."""
    cap = (4 * 1024 * 1024) // max(1, cin * itemsize)
    cap = max(128, min(2048, (cap // 128) * 128))
    best_t, best_pad = None, None
    for t in range(128, cap + 1, 128):
        pad = _round_up(hw, t)
        if best_pad is None or pad < best_pad or (pad == best_pad and t > best_t):
            best_t, best_pad = t, pad
    return best_t, best_pad


def _pick_bcast_tile(hw):
    """Output tile: largest multiple-of-128 exact divisor (<=2048), else full HW."""
    best = None
    for t in range(128, min(hw, 2048) + 1, 128):
        if hw % t == 0:
            best = t
    return best if best is not None else hw


# ----------------------------------------------------------------------------
# Wrapper
# ----------------------------------------------------------------------------
def aspp_pooling(x, weight):
    """x: (N, Cin, H, W); weight: (Cout, Cin) or (Cout, Cin, 1, 1) (bias=False)."""
    n, cin, h, w = x.shape
    if weight.ndim == 4:
        weight = weight.reshape(weight.shape[0], weight.shape[1])
    cout = weight.shape[0]
    hw = h * w
    itemsize = x.dtype.itemsize

    # Lane-dense flattening of the spatial dims.
    x_flat = x.reshape(n, cin, hw)
    t_red, hw_pad = _pick_reduce_tile(hw, cin, itemsize)
    if hw_pad != hw:
        # Zero padding does not change the sum; divide by true H*W below.
        x_flat = jnp.pad(x_flat, ((0, 0), (0, 0), (0, hw_pad - hw)))
    num_k = hw_pad // t_red

    # --- Kernel 1: global mean pool (tiled) + 1x1 conv + ReLU -> (N, Cout, 1) ---
    y = pl.pallas_call(
        functools.partial(_pool_conv_kernel, inv_hw=1.0 / float(hw)),
        out_shape=jax.ShapeDtypeStruct((n, cout, 1), jnp.float32),
        grid_spec=pltpu.PrefetchScalarGridSpec(
            num_scalar_prefetch=0,
            grid=(n, num_k),
            in_specs=[
                pl.BlockSpec((1, cin, t_red), lambda i, k: (i, 0, k)),
                pl.BlockSpec((cout, cin), lambda i, k: (0, 0)),
            ],
            out_specs=pl.BlockSpec((1, cout, 1), lambda i, k: (i, 0, 0)),
            scratch_shapes=[pltpu.VMEM((cin, 1), jnp.float32)],
        ),
        compiler_params=pltpu.CompilerParams(
            dimension_semantics=("parallel", "arbitrary")),
        cost_estimate=pl.CostEstimate(
            flops=int(n * cin * hw_pad + 2 * n * cin * cout),
            transcendentals=0,
            bytes_accessed=int(n * cin * hw_pad * itemsize
                               + cout * cin * weight.dtype.itemsize
                               + n * cout * 4),
        ),
    )(x_flat, weight)

    # --- Kernel 2: broadcast (bilinear upsample of a 1x1 map) -> (N, Cout, HW) ---
    t_b = _pick_bcast_tile(hw)
    num_j = hw // t_b
    out_flat = pl.pallas_call(
        _broadcast_kernel,
        out_shape=jax.ShapeDtypeStruct((n, cout, hw), x.dtype),
        grid_spec=pltpu.PrefetchScalarGridSpec(
            num_scalar_prefetch=0,
            grid=(n, num_j),
            in_specs=[pl.BlockSpec((1, cout, 1), lambda i, j: (i, 0, 0))],
            out_specs=pl.BlockSpec((1, cout, t_b), lambda i, j: (i, 0, j)),
        ),
        compiler_params=pltpu.CompilerParams(
            dimension_semantics=("parallel", "parallel")),
        cost_estimate=pl.CostEstimate(
            flops=0,
            transcendentals=0,
            bytes_accessed=int(n * cout * 4 + n * cout * hw * itemsize),
        ),
    )(y)

    return out_flat.reshape(n, cout, h, w)


# ----------------------------------------------------------------------------
# Pure-JAX reference
# ----------------------------------------------------------------------------
def aspp_pooling_ref(x, weight):
    if weight.ndim == 4:
        weight = weight.reshape(weight.shape[0], weight.shape[1])
    pooled = jnp.mean(x.astype(jnp.float32), axis=(2, 3))          # (N, Cin)
    y = jnp.maximum(pooled @ weight.astype(jnp.float32).T, 0.0)    # (N, Cout)
    n, cout = y.shape
    h, w = x.shape[2], x.shape[3]
    return jnp.broadcast_to(y[:, :, None, None], (n, cout, h, w)).astype(x.dtype)


if __name__ == "__main__":
    key = jax.random.PRNGKey(0)
    k_x, k_w = jax.random.split(key)

    N, Cin, Cout, H, W = 2, 4, 8, 16, 16
    x = jax.random.normal(k_x, (N, Cin, H, W), dtype=jnp.float32)
    # 1x1 conv weight (bias=False), shape (Cout, Cin, 1, 1) collapsed to (Cout, Cin).
    weight = jax.random.normal(k_w, (Cout, Cin), dtype=jnp.float32) * 0.1

    out = aspp_pooling(x, weight)
    out = jax.block_until_ready(out)

    ref = aspp_pooling_ref(x, weight)
    assert out.shape == (N, Cout, H, W)
    assert jnp.allclose(out, ref, atol=1e-5, rtol=1e-5)

    print("KERNEL_OK")
</pallas_src>

<mosaic_0001>
module attributes {stable_mosaic.version = 11 : i64} {
  func.func @_pool_conv_kernel(%arg0: i32, %arg1: i32, %arg2: memref<1x4x256xf32, #tpu.memory_space<vmem>>, %arg3: memref<8x4xf32, #tpu.memory_space<vmem>>, %arg4: memref<1x8x1xf32, #tpu.memory_space<vmem>>, %arg5: memref<4x1xf32, #tpu.memory_space<vmem>>) attributes {dimension_semantics = [#tpu.dimension_semantics<parallel>, #tpu.dimension_semantics<arbitrary>], iteration_bounds = array<i64: 2, 1>, scalar_prefetch = 0 : i64, scratch_operands = 1 : i64, tpu.core_type = #tpu.core_type<tc>, window_params = [{transform_indices = @transform_0, window_bounds = array<i64: 1, 4, 256>}, {pipeline_mode = #tpu.pipeline_mode<synchronous>, transform_indices = @transform_1, window_bounds = array<i64: 8, 4>}, {transform_indices = @transform_2, window_bounds = array<i64: 1, 8, 1>}]} {
    %c0_i32 = arith.constant 0 : i32
    %0 = arith.cmpi eq, %arg1, %c0_i32 : i32
    %1 = arith.extui %0 : i1 to i32
    %c0_i32_0 = arith.constant 0 : i32
    %2 = arith.cmpi ne, %1, %c0_i32_0 : i32
    scf.if %2 {
      %cst_9 = arith.constant 0.000000e+00 : f32
      %13 = vector.broadcast %cst_9 : f32 to vector<4x1xf32>
      %c0_10 = arith.constant 0 : index
      %c0_11 = arith.constant 0 : index
      %14 = vector.load %arg5[%c0_10, %c0_11] : memref<4x1xf32, #tpu.memory_space<vmem>>, vector<4x1xf32>
      tpu.vector_store %arg5[%c0_10, %c0_11], %13 {strides = array<i32>} : memref<4x1xf32, #tpu.memory_space<vmem>>, vector<4x1xf32>,
    } else {
    }
    %c0 = arith.constant 0 : index
    %c0_1 = arith.constant 0 : index
    %c0_2 = arith.constant 0 : index
    %3 = vector.load %arg2[%c0, %c0_1, %c0_2] : memref<1x4x256xf32, #tpu.memory_space<vmem>>, vector<1x4x256xf32>
    %4 = vector.shape_cast %3 : vector<1x4x256xf32> to vector<4x256xf32>
    %c0_3 = arith.constant 0 : index
    %c0_4 = arith.constant 0 : index
    %5 = vector.load %arg5[%c0_3, %c0_4] : memref<4x1xf32, #tpu.memory_space<vmem>>, vector<4x1xf32>
    %cst = arith.constant dense<0.000000e+00> : vector<4xf32>
    %6 = vector.multi_reduction <add>, %4, %cst [1] : vector<4x256xf32> to vector<4xf32>
    %7 = vector.shape_cast %6 : vector<4xf32> to vector<4x1xf32>
    %8 = arith.addf %5, %7 : vector<4x1xf32>
    %c0_5 = arith.constant 0 : index
    %c0_6 = arith.constant 0 : index
    %9 = vector.load %arg5[%c0_5, %c0_6] : memref<4x1xf32, #tpu.memory_space<vmem>>, vector<4x1xf32>
    tpu.vector_store %arg5[%c0_5, %c0_6], %8 {strides = array<i32>} : memref<4x1xf32, #tpu.memory_space<vmem>>, vector<4x1xf32>,
    %c0_i32_7 = arith.constant 0 : i32
    %10 = arith.cmpi eq, %arg1, %c0_i32_7 : i32
    %11 = arith.extui %10 : i1 to i32
    %c0_i32_8 = arith.constant 0 : i32
    %12 = arith.cmpi ne, %11, %c0_i32_8 : i32
    scf.if %12 {
      %c0_9 = arith.constant 0 : index
      %c0_10 = arith.constant 0 : index
      %13 = vector.load %arg5[%c0_9, %c0_10] : memref<4x1xf32, #tpu.memory_space<vmem>>, vector<4x1xf32>
      %cst_11 = arith.constant 3.906250e-03 : f32
      %14 = vector.broadcast %cst_11 : f32 to vector<4x1xf32>
      %15 = arith.mulf %13, %14 : vector<4x1xf32>
      %c0_12 = arith.constant 0 : index
      %c0_13 = arith.constant 0 : index
      %16 = vector.load %arg3[%c0_12, %c0_13] : memref<8x4xf32, #tpu.memory_space<vmem>>, vector<8x4xf32>
      %cst_14 = arith.constant dense<0.000000e+00> : vector<8x1xf32>
      %17 = tpu.matmul %16, %15, %cst_14 {dimension_numbers = #tpu.dot_dimension_numbers<[1], [0], [0], [1], [0, 0, 1, 1], [], []>} : vector<8x4xf32>, vector<4x1xf32>, vector<8x1xf32> -> vector<8x1xf32>
      %cst_15 = arith.constant 0.000000e+00 : f32
      %18 = vector.broadcast %cst_15 : f32 to vector<8x1xf32>
      %19 = arith.maximumf %17, %18 : vector<8x1xf32>
      %20 = vector.shape_cast %19 : vector<8x1xf32> to vector<1x8x1xf32>
      %c0_16 = arith.constant 0 : index
      %c0_17 = arith.constant 0 : index
      %c0_18 = arith.constant 0 : index
      %21 = vector.load %arg4[%c0_16, %c0_17, %c0_18] : memref<1x8x1xf32, #tpu.memory_space<vmem>>, vector<1x8x1xf32>
      tpu.vector_store %arg4[%c0_16, %c0_17, %c0_18], %20 {strides = array<i32>} : memref<1x8x1xf32, #tpu.memory_space<vmem>>, vector<1x8x1xf32>,
    } else {
    }
    return
  }
  func.func @transform_0(%arg0: i32, %arg1: i32) -> (i32, i32, i32) {
    %c0_i32 = arith.constant 0 : i32
    %c0_i32_0 = arith.constant 0 : i32
    return %arg0, %c0_i32, %arg1 : i32, i32, i32
  }
  func.func @transform_1(%arg0: i32, %arg1: i32) -> (i32, i32) {
    %c0_i32 = arith.constant 0 : i32
    %c0_i32_0 = arith.constant 0 : i32
    %c0_i32_1 = arith.constant 0 : i32
    return %c0_i32, %c0_i32_0 : i32, i32
  }
  func.func @transform_2(%arg0: i32, %arg1: i32) -> (i32, i32, i32) {
    %c0_i32 = arith.constant 0 : i32
    %c0_i32_0 = arith.constant 0 : i32
    %c0_i32_1 = arith.constant 0 : i32
    return %arg0, %c0_i32, %c0_i32_0 : i32, i32, i32
  }
}

</mosaic_0001>

<llo_original>
// kernel: tpu_custom_call.1
$region0: #{tpu_custom_call.1}
  #allocation0 [shape = 'u32[]', space=smem, size = 0x4, offset = 0x4, fixed_abs, tag = 'smem constant byte address 0x4 - core index']
  #allocation1 [shape = 'u32[144,128]{1,0:T(1,128)}', space=vmem, size = 0x12000, scoped, tag = 'internal scratch']
  #allocation2 [shape = 'f32[4,1]{1,0:T(4,128)}', space=vmem, size = 0x800, scoped, tag = 'scratch operand']
  %s0 = inlined_call_operand.hbm [shape: f32[2,4,256], index: 0, kind: input, shape index: {}]
  %s1 = inlined_call_operand.vmem [shape: f32[8,4], index: 1, kind: input, shape index: {}]
  %s2 = inlined_call_operand.vmem [shape: f32[2,8,1], index: 2, kind: output, shape index: {}]
  %s3 = sld [smem:[#allocation0]]
  $region53: #{tpu_custom_call.1} parent=0
    _
  %s5 = ssub.s32 1, %s3
  %s6 = scalar_select 0, %s5, %s3
  $region1: #{tpu_custom_call.1} parent=0
    #allocation3 [shape = 'u8[8192]{0}', space=vmem, size = 0x2000, scoped, tag = 'input window, operand 0']
    #allocation4 [shape = 's32[2]{0}', space=sflag, size = 0x8, scoped, tag = 'scoped memory for tpu_custom_call.1']
    %7 = vsyncpa [#allocation4], 0
    %s8 = scalar_lea.sflag [#allocation4], 1
    %9 = vsyncpa %s8, 0
    loop: start=0, step=1, limit=4
    $region2: #{tpu_custom_call.1} parent=1 // loop_pre_header
      _
    $region3: #{tpu_custom_call.1} parent=1 // loop_header
      %s11 = sphi 0, %s15
      %p12 = scmp.ge.s32.totalorder %s11, 4
      %s18 = sphi 0, %s30
      %s19 = sphi 0, %s26
      %s20 = sphi 0, %s18
      %s21 = sphi 0, %s19
      %s22 = sphi 0, %s20
      %s23 = sphi 0, %s21
      %s35 = sphi 0, %s37
      %s38 = sphi 0, %s35
      %s39 = sphi 0, %s38
      %s55 = sphi 0, %s39
      %s59 = sphi 0, %s59
      %s61 = sphi 0, %s59
      %s62 = sphi 0, %s61
      %s76 = sphi 0, %s62
      %s82 = sphi 0, %s84
      %s85 = sphi 0, %s82
      %s86 = sphi 0, %s85
      %s102 = sphi 0, %s86
    $region4: #{tpu_custom_call.1} parent=1 // loop_header_branch
      %14 = sbr.rel (%p12) target = $region8
    $region5: #{tpu_custom_call.1} parent=1 // loop_body
      %s16 = ssub.s32 %s11, 1
      %s17 = ssub.s32 %s11, 2
      %s24 = sadd.s32 1, %s19
      %p25 = scmp.ge.s32.totalorder %s24, 1
      %s26 = scalar_select %p25, 0, %s24
      %s27 = sadd.s32 1, %s18
      %s28 = scalar_select %p25, %s27, %s18
      %p29 = scmp.ge.s32.totalorder %s28, 2
      %s30 = scalar_select %p29, 0, %s28
      %s31 = ssub.s32 %s18, %s30
      %s32 = ssub.s32 %s19, %s26
      %s33 = sor.u32 %s31, %s32
      %p34 = scmp.eq.s32.totalorder %s33, 0
      %s36 = sadd.s32 %s35, 1
      %s37 = scalar_select %p34, %s35, %s36
      %p40 = pneg %p34
      %p41 = scmp.eq.s32.totalorder %s11, 1
      %p42 = por %p40, %p41
      %p43 = scmp.ne.s32.totalorder %s35, %s38
      %p44 = scmp.eq.s32.totalorder %s11, 0
      %p45 = por %p43, %p44
      %p46 = scmp.ne.s32.totalorder %s35, %s38
      %p47 = scmp.eq.s32.totalorder %s16, 1
      %p48 = por %p46, %p47
      %p49 = scmp.ne.s32.totalorder %s38, %s39
      %p50 = scmp.eq.s32.totalorder %s16, 0
      %p51 = por %p49, %p50
      %p52 = scmp.ne.s32.totalorder %s38, %s39
      %p53 = scmp.eq.s32.totalorder %s17, 1
      %p54 = por %p52, %p53
      %p56 = scmp.ne.s32.totalorder %s39, %s55
      %p57 = scmp.eq.s32.totalorder %s17, 0
      %p58 = por %p56, %p57
      %s60 = sadd.s32 %s59, 1
      %p63 = scmp.eq.s32.totalorder %s11, 1
      %p64 = scmp.ne.s32.totalorder %s59, %s61
      %p65 = scmp.eq.s32.totalorder %s11, 0
      %p66 = por %p64, %p65
      %p67 = scmp.ne.s32.totalorder %s59, %s61
      %p68 = scmp.eq.s32.totalorder %s16, 1
      %p69 = por %p67, %p68
      %p70 = scmp.ne.s32.totalorder %s61, %s62
      %p71 = scmp.eq.s32.totalorder %s16, 0
      %p72 = por %p70, %p71
      %p73 = scmp.ne.s32.totalorder %s61, %s62
      %p74 = scmp.eq.s32.totalorder %s17, 1
      %p75 = por %p73, %p74
      %p77 = scmp.ne.s32.totalorder %s62, %s76
      %p78 = scmp.eq.s32.totalorder %s17, 0
      %p79 = por %p77, %p78
      %s80 = ssub.s32 %s18, %s30
      %p81 = scmp.eq.s32.totalorder %s80, 0
      %s83 = sadd.s32 %s82, 1
      %s84 = scalar_select %p81, %s82, %s83
      %p87 = pneg %p81
      %p88 = scmp.eq.s32.totalorder %s11, 1
      %p89 = por %p87, %p88
      %p90 = scmp.ne.s32.totalorder %s82, %s85
      %p91 = scmp.eq.s32.totalorder %s11, 0
      %p92 = por %p90, %p91
      %p93 = scmp.ne.s32.totalorder %s82, %s85
      %p94 = scmp.eq.s32.totalorder %s16, 1
      %p95 = por %p93, %p94
      %p96 = scmp.ne.s32.totalorder %s85, %s86
      %p97 = scmp.eq.s32.totalorder %s16, 0
      %p98 = por %p96, %p97
      %p99 = scmp.ne.s32.totalorder %s85, %s86
      %p100 = scmp.eq.s32.totalorder %s17, 1
      %p101 = por %p99, %p100
      %p103 = scmp.ne.s32.totalorder %s86, %s102
      %p104 = scmp.eq.s32.totalorder %s17, 0
      %p105 = por %p103, %p104
      %p106 = scmp.le.s32.totalorder 1, %s11
      %p107 = scmp.lt.s32.totalorder %s11, 3
      %p108 = pnand %p106, %p107
      %p109 = pneg %p108
      // Predicated region
      $region9: #{tpu_custom_call.1} parent=5 // pred_check
        _
      $region10: #{tpu_custom_call.1} parent=5 // pred_check_branch
        %111 = sbr.rel (%p108) target = $region12
      $region11: #{tpu_custom_call.1} parent=5 // pred_region
        %s112 = ssub.s32 %s11, 1
        // Predicated region
        $region13: #{tpu_custom_call.1} parent=11 // pred_check
          %p113 = pneg %p72
        $region14: #{tpu_custom_call.1} parent=11 // pred_check_branch
          %115 = sbr.rel (%p113) target = $region16
        $region15: #{tpu_custom_call.1} parent=11 // pred_region
          _
        $region16: #{tpu_custom_call.1} parent=11 // pred_fallthru
          _
      $region12: #{tpu_custom_call.1} parent=5 // pred_fallthru
        _
      %p116 = scmp.lt.s32.totalorder %s11, 2
      // Predicated region
      $region17: #{tpu_custom_call.1} parent=5 // pred_check
        %p117 = pneg %p116
      $region18: #{tpu_custom_call.1} parent=5 // pred_check_branch
        %119 = sbr.rel (%p117) target = $region20
      $region19: #{tpu_custom_call.1} parent=5 // pred_region
        // Predicated region
        $region21: #{tpu_custom_call.1} parent=19 // pred_check
          %p120 = pneg %p45
        $region22: #{tpu_custom_call.1} parent=19 // pred_check_branch
          %122 = sbr.rel (%p120) target = $region24
        $region23: #{tpu_custom_call.1} parent=19 // pred_region
          %s123 = sand.u32 %s35, 1
          %s124 = scalar_lea.sflag [#allocation4], %s123
          %s125 = sand.u32 %s35, 1
          %s126 = smul.addr %s125, 8
          %s127 = scalar_lea.vmem [#allocation3], %s126
          %s128 = smul.u32 2, %s19
          %s130 = ssub.s32 128, 128
          %131 = vsyncadd %s124, %s130
          %s132 = smul.addr %s18, 2
          %s133 = sadd.s32 %s128, %s132
          %s134 = smul.addr %s133, 64
          %s135 = scalar_lea.hbm %s0, %s134
          %s137 = sshll.u32 %s127, 4
          %s138 = int_to_ptr.vmem [resolvable:$true] %s137
          %140 = dma.hbm_to_vmem [thread:$0]  %s135, 128, %s138, %s124
        $region24: #{tpu_custom_call.1} parent=19 // pred_fallthru
          _
      $region20: #{tpu_custom_call.1} parent=5 // pred_fallthru
        _
      %p141 = scmp.le.s32.totalorder 1, %s11
      %p142 = scmp.lt.s32.totalorder %s11, 3
      %p143 = pnand %p141, %p142
      %p144 = pneg %p143
      // Predicated region
      $region25: #{tpu_custom_call.1} parent=5 // pred_check
        _
      $region26: #{tpu_custom_call.1} parent=5 // pred_check_branch
        %146 = sbr.rel (%p143) target = $region28
      $region27: #{tpu_custom_call.1} parent=5 // pred_region
        %s147 = ssub.s32 %s11, 1
        %s148 = sand.u32 %s38, 1
        %s149 = scalar_lea.sflag [#allocation4], %s148
        %s150 = sand.u32 %s38, 1
        %s151 = smul.addr %s150, 8
        %s152 = scalar_lea.vmem [#allocation3], %s151
        // Predicated region
        $region29: #{tpu_custom_call.1} parent=27 // pred_check
          %p153 = pneg %p51
        $region30: #{tpu_custom_call.1} parent=27 // pred_check_branch
          %155 = sbr.rel (%p153) target = $region32
        $region31: #{tpu_custom_call.1} parent=27 // pred_region
          %156 = dma.done %s149, 128
        $region32: #{tpu_custom_call.1} parent=27 // pred_fallthru
          _
        %s157 = sand.u32 %s38, 1
        %s158 = scalar_lea.sflag [#allocation4], %s157
        %s159 = sand.u32 %s38, 1
        %s160 = smul.addr %s159, 8
        %s161 = scalar_lea.vmem [#allocation3], %s160
        %p162 = pneg %p51
        %p163 = pneg %p48
        %p164 = pneg %p72
        %p165 = pneg %p69
        %p166 = pneg %p98
        %p167 = pneg %p95
        %p168 = scmp.lt.s32.totalorder %s20, 1
        %s169 = scalar_select %p168, %s20, 1
        %s170 = smul.addr %s169, 8
        %s171 = scalar_lea.vmem %s2, %s170
        %s172 = smul.u32 2, %s21
        %p173 = scmp.lt.s32.totalorder %s20, 1
        %s174 = scalar_select %p173, %s20, 1
        %s175 = smul.addr %s174, 8
        %s176 = scalar_lea.vmem %s2, %s175
        %p177 = scmp.eq.s32.totalorder %s21, 0
        // Predicated region
        $region33: #{tpu_custom_call.1} parent=27 // pred_check
          %p178 = pneg %p177
        $region34: #{tpu_custom_call.1} parent=27 // pred_check_branch
          %180 = sbr.rel (%p178) target = $region36
        $region35: #{tpu_custom_call.1} parent=27 // pred_region
          %vm181 = vcmask 3072
          %182 = vst.msk [vmem:[#allocation2] sm:$0xf] %vm181, 0.0
        $region36: #{tpu_custom_call.1} parent=27 // pred_fallthru
          _
        %v183 = vld [vmem:[%s152] sm:$0xff]
        %v184 = vld [vmem:[#allocation2] sm:$0xf]
        %v186 = vcombine.high %v183, %v183
        %vm188 = vcmask 1043456
        %v189 = vsel %vm188, %v183, 0.0
        %v190 = vsel %vm188, %v186, 0.0
        %v191 = vadd.f32 %v189, %v190
        %192 = vadd.xlane.f32.xlu0 %v191
        %v193 = vpop.xlane.xlu0 %192
        %v194 = vadd.f32 %v184, %v193
        %vm195 = vcmask 3072
        %196 = vst.msk [vmem:[#allocation2] sm:$0xf] %vm195, %v194
        // Predicated region
        $region37: #{tpu_custom_call.1} parent=27 // pred_check
          %p197 = pneg %p177
        $region38: #{tpu_custom_call.1} parent=27 // pred_check_branch
          %199 = sbr.rel (%p197) target = $region40
        $region39: #{tpu_custom_call.1} parent=27 // pred_region
          %v200 = vld [vmem:[#allocation2] sm:$0xf]
          %v201 = vmul.f32 %v200, 0.00390625
          %v202 = vld [vmem:[%s1] sm:$0xff]
          %vm203 = vcmask 31744
          %v205 = vsel %vm203, %v202, 0
          %v208 = vsel %vm188, %v201, 0
          %210 = vmatprep.subr.mxu0 0.0
          %211 = vmatpush1.msra.mxu0 0.0
          %212 = vmatprep.subr.mxu0 0.0
          %213 = vmatpush1.msra.mxu0 0.0
          %214 = vmatprep.subr.mxu0 0.0
          %215 = vmatpush1.msra.mxu0 0.0
          %216 = vmatprep.subr.mxu0 0.0
          %217 = vmatpush1.msra.mxu0 0.0
          %218 = vmatprep.subr.mxu0 0.0
          %219 = vmatpush1.msra.mxu0 0.0
          %220 = vmatprep.subr.mxu0 0.0
          %221 = vmatpush1.msra.mxu0 0.0
          %222 = vmatprep.subr.mxu0 0.0
          %223 = vmatpush1.msra.mxu0 0.0
          %224 = vmatprep.subr.mxu0 0.0
          %225 = vmatpush1.msra.mxu0 0.0
          %226 = vmatprep.subr.mxu0 0.0
          %227 = vmatpush1.msra.mxu0 0.0
          %228 = vmatprep.subr.mxu0 0.0
          %229 = vmatpush1.msra.mxu0 0.0
          %230 = vmatprep.subr.mxu0 0.0
          %231 = vmatpush1.msra.mxu0 0.0
          %232 = vmatprep.subr.mxu0 0.0
          %233 = vmatpush1.msra.mxu0 0.0
          %234 = vmatprep.subr.mxu0 0.0
          %235 = vmatpush1.msra.mxu0 0.0
          %236 = vmatprep.subr.mxu0 0.0
          %237 = vmatpush1.msra.mxu0 0.0
          %238 = vmatprep.subr.mxu0 0.0
          %239 = vmatpush1.msra.mxu0 0.0
          %240 = vmatprep.subr.mxu0 0.0
          %241 = vmatpush1.msra.mxu0 %v208
          %242 = vmatprep.subr.mxu0 0.0
          %243 = vmatpush2.msra.mxu0 0.0
          %244 = vmatprep.subr.mxu0 0.0
          %245 = vmatpush2.msra.mxu0 0.0
          %246 = vmatprep.subr.mxu0 0.0
          %247 = vmatpush2.msra.mxu0 0.0
          %248 = vmatprep.subr.mxu0 0.0
          %249 = vmatpush2.msra.mxu0 0.0
          %250 = vmatprep.subr.mxu0 0.0
          %251 = vmatpush2.msra.mxu0 0.0
          %252 = vmatprep.subr.mxu0 0.0
          %253 = vmatpush2.msra.mxu0 0.0
          %254 = vmatprep.subr.mxu0 0.0
          %255 = vmatpush2.msra.mxu0 0.0
          %256 = vmatprep.subr.mxu0 0.0
          %257 = vmatpush2.msra.mxu0 0.0
          %258 = vmatprep.subr.mxu0 0.0
          %259 = vmatpush2.msra.mxu0 0.0
          %260 = vmatprep.subr.mxu0 0.0
          %261 = vmatpush2.msra.mxu0 0.0
          %262 = vmatprep.subr.mxu0 0.0
          %263 = vmatpush2.msra.mxu0 0.0
          %264 = vmatprep.subr.mxu0 0.0
          %265 = vmatpush2.msra.mxu0 0.0
          %266 = vmatprep.subr.mxu0 0.0
          %267 = vmatpush2.msra.mxu0 0.0
          %268 = vmatprep.subr.mxu0 0.0
          %269 = vmatpush2.msra.mxu0 0.0
          %270 = vmatprep.subr.mxu0 0.0
          %271 = vmatpush2.msra.mxu0 0.0
          %272 = vmatprep.subr.mxu0 0.0
          %273 = vmatpush2.msra.mxu0 0.0
          %274 = vmatprep.mubr.f32.mxu0 0.0
          %275 = vmatmul.mubr.f32.gmra.mxu0 %v205
          %v276 = vpop.f32.mrf.mxu0
          %v277 = vadd.f32 0.0, %v276
          %v278 = vpop.f32.mrf.mxu0
          %279 = vdwg.mxu0
          %v280 = vmax.f32 %v277, 0.0
          %vm281 = vcmask 7168
          %282 = vst.msk [vmem:[%s176] sm:$0xff] %vm281, %v280
        $region40: #{tpu_custom_call.1} parent=27 // pred_fallthru
          _
        %p283 = scmp.lt.s32.totalorder %s20, 1
        %s284 = scalar_select %p283, %s20, 1
        %s285 = smul.addr %s284, 8
        %s286 = scalar_lea.vmem %s2, %s285
        // Predicated region
        $region41: #{tpu_custom_call.1} parent=27 // pred_check
          %p287 = pneg %p95
        $region42: #{tpu_custom_call.1} parent=27 // pred_check_branch
          %289 = sbr.rel (%p287) target = $region44
        $region43: #{tpu_custom_call.1} parent=27 // pred_region
          _
        $region44: #{tpu_custom_call.1} parent=27 // pred_fallthru
          _
      $region28: #{tpu_custom_call.1} parent=5 // pred_fallthru
        _
      %p290 = scmp.le.s32.totalorder 2, %s11
      // Predicated region
      $region45: #{tpu_custom_call.1} parent=5 // pred_check
        %p291 = pneg %p290
      $region46: #{tpu_custom_call.1} parent=5 // pred_check_branch
        %293 = sbr.rel (%p291) target = $region48
      $region47: #{tpu_custom_call.1} parent=5 // pred_region
        %s294 = ssub.s32 %s11, 2
        // Predicated region
        $region49: #{tpu_custom_call.1} parent=47 // pred_check
          %p295 = pneg %p101
        $region50: #{tpu_custom_call.1} parent=47 // pred_check_branch
          %297 = sbr.rel (%p295) target = $region52
        $region51: #{tpu_custom_call.1} parent=47 // pred_region
          %p298 = scmp.lt.s32.totalorder %s22, 1
          %s299 = scalar_select %p298, %s22, 1
          %s300 = smul.addr %s299, 8
          %s301 = scalar_lea.vmem %s2, %s300
        $region52: #{tpu_custom_call.1} parent=47 // pred_fallthru
          _
      $region48: #{tpu_custom_call.1} parent=5 // pred_fallthru
        _
    $region6: #{tpu_custom_call.1} parent=1 // loop_footer
      %s15 = sadd.s32 1, %s11
    $region7: #{tpu_custom_call.1} parent=1 // loop_footer_branch
      %10 = sbr.rel target = $region3
    $region8: #{tpu_custom_call.1} parent=1 // loop_exit
      _
    %302 = vsyncpa [#allocation4], 1
    %s303 = scalar_lea.sflag [#allocation4], 1
    %304 = vsyncpa %s303, 1

</llo_original>
